<compile_context>
chip_gen: v6e
topology: v6e:2x2x1
jax: 0.10.0
libtpu: 0.0.40
codegen_flags: <defaults>
</compile_context>

<pallas_src>
import jax
import jax.numpy as jnp
from jax.experimental import pallas as pl
from jax.experimental.pallas import tpu as pltpu


# --------------------------------------------------------------------------
# Kernel body
# --------------------------------------------------------------------------
def _vae_latent_encoder_kernel(x_ref, w_ref, tok_ref, o_ref):
    # x_ref:   (tb, L)      VMEM  batch tile of VAE embeddings
    # w_ref:   (L, td)      VMEM  pre-transposed projection weight tile
    # tok_ref: (T, td)      VMEM  latent token embedding tile (bias pre-folded)
    # o_ref:   (tb, T, td)  VMEM  output tile
    proj = jnp.dot(x_ref[...], w_ref[...],
                   preferred_element_type=jnp.float32)        # (tb, td) on MXU
    out = proj[:, None, :] + tok_ref[...][None, :, :]         # (tb, T, td)
    o_ref[...] = out.astype(o_ref.dtype)


# --------------------------------------------------------------------------
# Tile selection helpers
# --------------------------------------------------------------------------
def _round_down(x, m):
    return (x // m) * m


def _full_or_aligned_tile(dim, align, cap):
    """Tile that is either the full dimension (always legal) or a multiple of
    `align` (satisfies the (8, 128) BlockSpec rule). Ragged last tiles are
    handled by the cdiv grid."""
    if dim <= align:
        return dim
    t = min(cap, dim)
    return max(align, _round_down(t, align))


def _vmem_params():
    """Per-generation VMEM budget for pipelined tiles + scoped limit."""
    try:
        phys = int(pltpu.get_tpu_info().vmem_capacity_bytes)
    except Exception:
        phys = 64 << 20  # assume the smallest physical VMEM (v7x) if query fails
    tile_budget = min(phys // 2, 48 << 20)       # double-buffered tile footprint
    vmem_limit = min((phys * 3) // 4, 96 << 20)  # scoped VMEM requested from Mosaic
    return tile_budget, vmem_limit


def _select_tiles(B, T, D, L, budget_bytes):
    """Pick (tb, td): largest legal tiles whose double-buffered footprint
    (x, w, tok and the T-scaled output tile) fits the VMEM budget."""
    itemsize = 4  # size conservatively in f32
    tb = _full_or_aligned_tile(B, 8, 512)
    td = _full_or_aligned_tile(D, 128, 1024)
    min_tb = min(B, 8)
    min_td = min(D, 128)

    def footprint(tb_, td_):
        return 2 * itemsize * (tb_ * L + L * td_ + T * td_ + tb_ * T * td_)

    while footprint(tb, td) > budget_bytes and (tb > min_tb or td > min_td):
        if tb > min_tb:
            tb = max(min_tb, _round_down(max(tb // 2, 8), 8))
        else:
            td = max(min_td, _round_down(max(td // 2, 128), 128))
    return tb, td


def _maybe_split_for_megacore(B, D, tb, td):
    """Keep >=2 grid programs when the problem is big enough, so v7x's second
    TensorCore (and software pipelining in general) has work to do."""
    if pl.cdiv(B, tb) * pl.cdiv(D, td) >= 2:
        return tb, td
    if D >= 256:
        half = -(-D // 2)                      # ceil(D / 2)
        td = min(td, max(128, ((half + 127) // 128) * 128))
    elif B >= 16:
        half = -(-B // 2)                      # ceil(B / 2)
        tb = min(tb, max(8, ((half + 7) // 8) * 8))
    return tb, td


# --------------------------------------------------------------------------
# Public wrapper
# --------------------------------------------------------------------------
def vae_latent_encoder(vae_embedding, weight, bias, latent_token_embedding,
                       out_dtype=None):
    """
    vae_embedding:           (B, latent_dim)              float32
    weight:                  (d_model, latent_dim)        float32 (nn.Linear layout)
    bias:                    (d_model,)                   float32
    latent_token_embedding:  (num_latent_tokens, d_model) float32
    out_dtype:               optional (e.g. jnp.bfloat16 to halve the dominant
                             HBM writeback when downstream tolerates it)
    returns:                 (B, num_latent_tokens, d_model)
    """
    B, L = vae_embedding.shape
    D, L2 = weight.shape
    assert L == L2, "weight/latent_dim mismatch"
    T, D2 = latent_token_embedding.shape
    assert D == D2, "weight/token-embedding d_model mismatch"
    if out_dtype is None:
        out_dtype = vae_embedding.dtype

    # One-time wrapper-side prep (tiny vs. the output writeback):
    #   * fold bias into the token embedding: (xW + b) + tok == xW + (tok + b)
    #   * pre-transpose the weight to (L, D) -> MXU-natural (K, N) operand and
    #     a lane-dense weight tile; removes per-grid-step transposes.
    tok_plus_b = latent_token_embedding + bias[None, :]
    w_t = jnp.transpose(weight)                               # (L, D)

    tile_budget, vmem_limit = _vmem_params()
    tb, td = _select_tiles(B, T, D, L, tile_budget)
    tb, td = _maybe_split_for_megacore(B, D, tb, td)
    grid = (pl.cdiv(B, tb), pl.cdiv(D, td))

    out_itemsize = jnp.dtype(out_dtype).itemsize
    cost = pl.CostEstimate(
        flops=2 * B * D * L,
        transcendentals=0,
        bytes_accessed=4 * (B * L + L * D + T * D) + out_itemsize * B * T * D,
    )

    # TODO(synk): if T is large and not a multiple of 8, a flattened (B*T, D)
    # output layout would keep sublane stores fully dense; the 3-D block form
    # used here is already dense for T that is a multiple of 8 (e.g. T=8).
    return pl.pallas_call(
        _vae_latent_encoder_kernel,
        out_shape=jax.ShapeDtypeStruct((B, T, D), out_dtype),
        grid=grid,
        in_specs=[
            pl.BlockSpec((tb, L), lambda i, j: (i, 0)),   # x: resident across D tiles
            pl.BlockSpec((L, td), lambda i, j: (0, j)),   # W^T tile (lane-dense)
            pl.BlockSpec((T, td), lambda i, j: (0, j)),   # token embedding (+bias)
        ],
        out_specs=pl.BlockSpec((tb, T, td), lambda i, j: (i, 0, j)),
        compiler_params=pltpu.CompilerParams(
            dimension_semantics=("parallel", "parallel"),
            vmem_limit_bytes=vmem_limit,
        ),
        cost_estimate=cost,
    )(vae_embedding, w_t, tok_plus_b)


# --------------------------------------------------------------------------
# Demo / correctness check
# --------------------------------------------------------------------------
if __name__ == "__main__":
    # Small shapes consistent with the module's forward.
    batch = 2
    latent_dim = 32
    d_model = 128
    num_latent_tokens = 8

    key = jax.random.PRNGKey(0)
    k_x, k_w, k_b, k_tok = jax.random.split(key, 4)

    vae_embedding = jax.random.normal(k_x, (batch, latent_dim), jnp.float32)
    weight = jax.random.normal(k_w, (d_model, latent_dim), jnp.float32) * 0.05
    bias = jax.random.normal(k_b, (d_model,), jnp.float32) * 0.01
    latent_token_embedding = jax.random.normal(
        k_tok, (num_latent_tokens, d_model), jnp.float32)

    out = vae_latent_encoder(vae_embedding, weight, bias, latent_token_embedding)
    out = jax.block_until_ready(out)

    # Reference check in plain JAX (same semantics as the PyTorch forward).
    proj_ref = vae_embedding @ weight.T + bias
    ref = proj_ref[:, None, :] + latent_token_embedding[None, :, :]
    assert out.shape == (batch, num_latent_tokens, d_model)
    assert jnp.allclose(out, ref, atol=1e-5, rtol=1e-5)

    print("KERNEL_OK")
</pallas_src>

<mosaic_0001>
module attributes {stable_mosaic.version = 11 : i64} {
  func.func @_vae_latent_encoder_kernel(%arg0: i32, %arg1: i32, %arg2: memref<2x32xf32, #tpu.memory_space<vmem>>, %arg3: memref<32x128xf32, #tpu.memory_space<vmem>>, %arg4: memref<8x128xf32, #tpu.memory_space<vmem>>, %arg5: memref<2x8x128xf32, #tpu.memory_space<vmem>>) attributes {dimension_semantics = [#tpu.dimension_semantics<parallel>, #tpu.dimension_semantics<parallel>], iteration_bounds = array<i64: 1, 1>, scalar_prefetch = 0 : i64, scratch_operands = 0 : i64, tpu.core_type = #tpu.core_type<tc>, window_params = [{transform_indices = @transform_0, window_bounds = array<i64: 2, 32>}, {transform_indices = @transform_1, window_bounds = array<i64: 32, 128>}, {transform_indices = @transform_2, window_bounds = array<i64: 8, 128>}, {transform_indices = @transform_3, window_bounds = array<i64: 2, 8, 128>}]} {
    %c0 = arith.constant 0 : index
    %c0_0 = arith.constant 0 : index
    %0 = vector.load %arg2[%c0, %c0_0] : memref<2x32xf32, #tpu.memory_space<vmem>>, vector<2x32xf32>
    %c0_1 = arith.constant 0 : index
    %c0_2 = arith.constant 0 : index
    %1 = vector.load %arg3[%c0_1, %c0_2] : memref<32x128xf32, #tpu.memory_space<vmem>>, vector<32x128xf32>
    %cst = arith.constant dense<0.000000e+00> : vector<2x128xf32>
    %2 = tpu.matmul %0, %1, %cst {dimension_numbers = #tpu.dot_dimension_numbers<[1], [0], [0], [1], [0, 0, 1, 1], [], []>} : vector<2x32xf32>, vector<32x128xf32>, vector<2x128xf32> -> vector<2x128xf32>
    %3 = vector.shape_cast %2 : vector<2x128xf32> to vector<2x1x128xf32>
    %c0_3 = arith.constant 0 : index
    %c0_4 = arith.constant 0 : index
    %4 = vector.load %arg4[%c0_3, %c0_4] : memref<8x128xf32, #tpu.memory_space<vmem>>, vector<8x128xf32>
    %5 = vector.shape_cast %4 : vector<8x128xf32> to vector<1x8x128xf32>
    %6 = vector.broadcast %3 : vector<2x1x128xf32> to vector<2x8x128xf32>
    %7 = vector.broadcast %5 : vector<1x8x128xf32> to vector<2x8x128xf32>
    %8 = arith.addf %6, %7 : vector<2x8x128xf32>
    %c0_5 = arith.constant 0 : index
    %c0_6 = arith.constant 0 : index
    %c0_7 = arith.constant 0 : index
    %9 = vector.load %arg5[%c0_5, %c0_6, %c0_7] : memref<2x8x128xf32, #tpu.memory_space<vmem>>, vector<2x8x128xf32>
    tpu.vector_store %arg5[%c0_5, %c0_6, %c0_7], %8 {strides = array<i32>} : memref<2x8x128xf32, #tpu.memory_space<vmem>>, vector<2x8x128xf32>,
    return
  }
  func.func @transform_0(%arg0: i32, %arg1: i32) -> (i32, i32) {
    %c0_i32 = arith.constant 0 : i32
    %c0_i32_0 = arith.constant 0 : i32
    return %arg0, %c0_i32 : i32, i32
  }
  func.func @transform_1(%arg0: i32, %arg1: i32) -> (i32, i32) {
    %c0_i32 = arith.constant 0 : i32
    %c0_i32_0 = arith.constant 0 : i32
    return %c0_i32, %arg1 : i32, i32
  }
  func.func @transform_2(%arg0: i32, %arg1: i32) -> (i32, i32) {
    %c0_i32 = arith.constant 0 : i32
    %c0_i32_0 = arith.constant 0 : i32
    return %c0_i32, %arg1 : i32, i32
  }
  func.func @transform_3(%arg0: i32, %arg1: i32) -> (i32, i32, i32) {
    %c0_i32 = arith.constant 0 : i32
    %c0_i32_0 = arith.constant 0 : i32
    return %arg0, %c0_i32, %arg1 : i32, i32, i32
  }
}

</mosaic_0001>

<llo_original>
// kernel: tpu_custom_call.1
$region0: #{tpu_custom_call.1}
  #allocation0 [shape = 'u32[]', space=smem, size = 0x4, offset = 0x4, fixed_abs, tag = 'smem constant byte address 0x4 - core index']
  #allocation1 [shape = 'u32[144,128]{1,0:T(1,128)}', space=vmem, size = 0x12000, scoped, tag = 'internal scratch']
  %s0 = inlined_call_operand.hbm [shape: f32[2,32], index: 0, kind: input, shape index: {}]
  %s1 = inlined_call_operand.hbm [shape: f32[32,128], index: 1, kind: input, shape index: {}]
  %s2 = inlined_call_operand.hbm [shape: f32[8,128], index: 2, kind: input, shape index: {}]
  %s3 = inlined_call_operand.hbm [shape: f32[2,8,128], index: 3, kind: output, shape index: {}]
  %s4 = sld [smem:[#allocation0]]
  $region34: #{tpu_custom_call.1} parent=0
    _
  %s6 = ssub.s32 1, %s4
  %s7 = scalar_select 0, %s6, %s4
  $region1: #{tpu_custom_call.1} parent=0
    #allocation2 [shape = 'u8[1024]{0}', space=vmem, size = 0x400, scoped, tag = 'input window, operand 0, single buffered']
    #allocation3 [shape = 's32[1]{0}', space=sflag, size = 0x4, scoped, tag = 'scoped memory for tpu_custom_call.1']
    #allocation4 [shape = 's32[1]{0}', space=sflag, size = 0x4, scoped, tag = 'scoped memory for tpu_custom_call.1']
    #allocation5 [shape = 'u8[16384]{0}', space=vmem, size = 0x4000, scoped, tag = 'input window, operand 1, single buffered']
    #allocation6 [shape = 's32[1]{0}', space=sflag, size = 0x4, scoped, tag = 'scoped memory for tpu_custom_call.1']
    #allocation7 [shape = 'u8[4096]{0}', space=vmem, size = 0x1000, scoped, tag = 'input window, operand 2, single buffered']
    #allocation8 [shape = 'u8[8192]{0}', space=vmem, size = 0x2000, scoped, tag = 'output window, operand 0, single buffered']
    %8 = vsyncpa [#allocation3], 0
    %9 = vsyncpa [#allocation6], 0
    %10 = vsyncpa [#allocation4], 0
    // Predicated region
    $region2: #{tpu_custom_call.1} parent=1 // pred_check
      _
    $region3: #{tpu_custom_call.1} parent=1 // pred_check_branch
      %12 = sbr.rel (0) target = $region5
    $region4: #{tpu_custom_call.1} parent=1 // pred_region
      %s14 = ssub.s32 32, 32
      %15 = vsyncadd [#allocation3], %s14
      %s17 = sshll.u32 [#allocation2], 4
      %s18 = int_to_ptr.vmem [resolvable:$true] %s17
      %20 = dma.hbm_to_vmem [thread:$0]  %s0, 32, %s18, [#allocation3]
    $region5: #{tpu_custom_call.1} parent=1 // pred_fallthru
      _
    // Predicated region
    $region6: #{tpu_custom_call.1} parent=1 // pred_check
      _
    $region7: #{tpu_custom_call.1} parent=1 // pred_check_branch
      %22 = sbr.rel (0) target = $region9
    $region8: #{tpu_custom_call.1} parent=1 // pred_region
      %s24 = ssub.s32 512, 512
      %25 = vsyncadd [#allocation6], %s24
      %s26 = sshll.u32 [#allocation5], 4
      %s27 = int_to_ptr.vmem [resolvable:$true] %s26
      %32 = dma.hbm_to_vmem [thread:$0]  %s1, 512, %s27, [#allocation6], 128, 128, 8
    $region9: #{tpu_custom_call.1} parent=1 // pred_fallthru
      _
    // Predicated region
    $region10: #{tpu_custom_call.1} parent=1 // pred_check
      _
    $region11: #{tpu_custom_call.1} parent=1 // pred_check_branch
      %34 = sbr.rel (0) target = $region13
    $region12: #{tpu_custom_call.1} parent=1 // pred_region
      %s36 = ssub.s32 128, 128
      %37 = vsyncadd [#allocation6], %s36
      %s39 = sshll.u32 [#allocation7], 4
      %s40 = int_to_ptr.vmem [resolvable:$true] %s39
      %42 = dma.hbm_to_vmem [thread:$0]  %s2, 128, %s40, [#allocation6]
    $region13: #{tpu_custom_call.1} parent=1 // pred_fallthru
      _
    // Predicated region
    $region14: #{tpu_custom_call.1} parent=1 // pred_check
      _
    $region15: #{tpu_custom_call.1} parent=1 // pred_check_branch
      %44 = sbr.rel (0) target = $region17
    $region16: #{tpu_custom_call.1} parent=1 // pred_region
      %45 = dma.done [#allocation3], 32
    $region17: #{tpu_custom_call.1} parent=1 // pred_fallthru
      _
    // Predicated region
    $region18: #{tpu_custom_call.1} parent=1 // pred_check
      _
    $region19: #{tpu_custom_call.1} parent=1 // pred_check_branch
      %47 = sbr.rel (0) target = $region21
    $region20: #{tpu_custom_call.1} parent=1 // pred_region
      %48 = dma.done [#allocation6], 512
    $region21: #{tpu_custom_call.1} parent=1 // pred_fallthru
      _
    // Predicated region
    $region22: #{tpu_custom_call.1} parent=1 // pred_check
      _
    $region23: #{tpu_custom_call.1} parent=1 // pred_check_branch
      %50 = sbr.rel (0) target = $region25
    $region24: #{tpu_custom_call.1} parent=1 // pred_region
      %51 = dma.done [#allocation6], 128
    $region25: #{tpu_custom_call.1} parent=1 // pred_fallthru
      _
    %v52 = vld [vmem:[#allocation2] sm:$0x3]
    %v53 = vld [vmem:[#allocation5] sm:$0xff]
    %v54 = vld [vmem:[#allocation5 + $0x8] sm:$0xff]
    %v55 = vld [vmem:[#allocation5 + $0x10] sm:$0xff]
    %v56 = vld [vmem:[#allocation5 + $0x18] sm:$0xff]
    %vm57 = vcmask 261120
    %v59 = vsel %vm57, %v52, 0
    %61 = vmatprep.subr.mxu0 0.0
    %62 = vmatpush1.msra.mxu0 0.0
    %63 = vmatprep.subr.mxu0 0.0
    %64 = vmatpush1.msra.mxu0 0.0
    %65 = vmatprep.subr.mxu0 0.0
    %66 = vmatpush1.msra.mxu0 0.0
    %67 = vmatprep.subr.mxu0 0.0
    %68 = vmatpush1.msra.mxu0 0.0
    %69 = vmatprep.subr.mxu0 0.0
    %70 = vmatpush1.msra.mxu0 0.0
    %71 = vmatprep.subr.mxu0 0.0
    %72 = vmatpush1.msra.mxu0 0.0
    %73 = vmatprep.subr.mxu0 0.0
    %74 = vmatpush1.msra.mxu0 0.0
    %75 = vmatprep.subr.mxu0 0.0
    %76 = vmatpush1.msra.mxu0 0.0
    %77 = vmatprep.subr.mxu0 0.0
    %78 = vmatpush1.msra.mxu0 0.0
    %79 = vmatprep.subr.mxu0 0.0
    %80 = vmatpush1.msra.mxu0 0.0
    %81 = vmatprep.subr.mxu0 0.0
    %82 = vmatpush1.msra.mxu0 0.0
    %83 = vmatprep.subr.mxu0 0.0
    %84 = vmatpush1.msra.mxu0 0.0
    %85 = vmatprep.subr.mxu0 0.0
    %86 = vmatpush1.msra.mxu0 %v56
    %87 = vmatprep.subr.mxu0 0.0
    %88 = vmatpush1.msra.mxu0 %v55
    %89 = vmatprep.subr.mxu0 0.0
    %90 = vmatpush1.msra.mxu0 %v54
    %91 = vmatprep.subr.mxu0 0.0
    %92 = vmatpush1.msra.mxu0 %v53
    %93 = vmatprep.subr.mxu0 0.0
    %94 = vmatpush2.msra.mxu0 0.0
    %95 = vmatprep.subr.mxu0 0.0
    %96 = vmatpush2.msra.mxu0 0.0
    %97 = vmatprep.subr.mxu0 0.0
    %98 = vmatpush2.msra.mxu0 0.0
    %99 = vmatprep.subr.mxu0 0.0
    %100 = vmatpush2.msra.mxu0 0.0
    %101 = vmatprep.subr.mxu0 0.0
    %102 = vmatpush2.msra.mxu0 0.0
    %103 = vmatprep.subr.mxu0 0.0
    %104 = vmatpush2.msra.mxu0 0.0
    %105 = vmatprep.subr.mxu0 0.0
    %106 = vmatpush2.msra.mxu0 0.0
    %107 = vmatprep.subr.mxu0 0.0
    %108 = vmatpush2.msra.mxu0 0.0
    %109 = vmatprep.subr.mxu0 0.0
    %110 = vmatpush2.msra.mxu0 0.0
    %111 = vmatprep.subr.mxu0 0.0
    %112 = vmatpush2.msra.mxu0 0.0
    %113 = vmatprep.subr.mxu0 0.0
    %114 = vmatpush2.msra.mxu0 0.0
    %115 = vmatprep.subr.mxu0 0.0
    %116 = vmatpush2.msra.mxu0 0.0
    %117 = vmatprep.subr.mxu0 0.0
    %118 = vmatpush2.msra.mxu0 0.0
    %119 = vmatprep.subr.mxu0 0.0
    %120 = vmatpush2.msra.mxu0 0.0
    %121 = vmatprep.subr.mxu0 0.0
    %122 = vmatpush2.msra.mxu0 0.0
    %123 = vmatprep.subr.mxu0 0.0
    %124 = vmatpush2.msra.mxu0 0.0
    %125 = vmatprep.mubr.f32.mxu0 0.0
    %126 = vmatmul.mubr.f32.gmra.mxu0 %v59
    %v127 = vpop.f32.mrf.mxu0
    %v128 = vadd.f32 0.0, %v127
    %v129 = vpop.f32.mrf.mxu0
    %130 = vdwg.mxu0
    %v133 = vunpack.c.l.s4 1966171168
    %v134 = vunpack.c.0.s8 %v133
    %v135 = vlaneseq
    %v136 = vshrl.u32 %v135, 7
    %v137 = vsub.s32 %v134, %v136
    %v138 = vrot.slane %v128, %v137
    %v139 = vcombine.high %v138, %v138
    %v141 = vunpack.c.l.s4 1966171168
    %v142 = vunpack.c.0.s8 %v141
    %v143 = vlaneseq
    %v144 = vshrl.u32 %v143, 7
    %v145 = vsub.s32 %v142, %v144
    %v146 = vrot.slane %v138, %v145
    %v148 = vunpack.c.l.s4 1966171168
    %v149 = vunpack.c.0.s8 %v148
    %v150 = vlaneseq
    %v151 = vshrl.u32 %v150, 7
    %v152 = vsub.s32 %v149, %v151
    %v153 = vrot.slane %v139, %v152
    %v154 = vld [vmem:[#allocation7] sm:$0xff]
    %v155 = vlaneseq
    %v156 = vshrl.u32 %v155, 7
    %v157 = vsub.s32 0, %v156
    %v158 = vrot.slane %v146, %v157
    %v159 = vlaneseq
    %v160 = vshrl.u32 %v159, 7
    %v161 = vsub.s32 0, %v160
    %v162 = vrot.slane %v153, %v161
    %v165 = vadd.f32 %v158, %v154
    %v166 = vadd.f32 %v162, %v154
    %167 = vst [vmem:[#allocation8] sm:$0xff] %v165
    %168 = vst [vmem:[#allocation8 + $0x8] sm:$0xff] %v166
    // Predicated region
    $region26: #{tpu_custom_call.1} parent=1 // pred_check
      _
    $region27: #{tpu_custom_call.1} parent=1 // pred_check_branch
      %170 = sbr.rel (0) target = $region29
    $region28: #{tpu_custom_call.1} parent=1 // pred_region
      %s172 = ssub.s32 256, 256
      %173 = vsyncadd [#allocation4], %s172
      %s174 = sshll.u32 [#allocation8], 4
      %s175 = int_to_ptr.vmem [resolvable:$true] %s174
      %180 = dma.vmem_to_hbm [thread:$0]  %s175, 256, %s3, [#allocation4], 128, 128, 8
    $region29: #{tpu_custom_call.1} parent=1 // pred_fallthru
      _
    // Predicated region
    $region30: #{tpu_custom_call.1} parent=1 // pred_check
      _
    $region31: #{tpu_custom_call.1} parent=1 // pred_check_branch
      %182 = sbr.rel (0) target = $region33
    $region32: #{tpu_custom_call.1} parent=1 // pred_region
      %183 = dma.done [#allocation4], 256
    $region33: #{tpu_custom_call.1} parent=1 // pred_fallthru
      _
    %184 = vsyncpa [#allocation3], 1
    %185 = vsyncpa [#allocation6], 1
    %186 = vsyncpa [#allocation4], 1

</llo_original>
